<compile_context>
chip_gen: v7x
topology: tpu7x:2x2x1
jax: 0.10.0
libtpu: 0.0.40
codegen_flags: <defaults>
</compile_context>

<pallas_src>
import jax
import jax.numpy as jnp
from jax.experimental import pallas as pl
from jax.experimental.pallas import tpu as pltpu

_TARGET_TILE_BYTES = 2 << 20    # ~2 MiB per tile per the perf review
_VMEM_CAP_BYTES = 48 << 20      # safe ceiling on v7x; fine on v5e/v6e too


def _zero_kernel(x_ref, o_ref):
    # Faithful to torch's x.mul(0.0): NaN/Inf inputs propagate to NaN.
    # Pure VPU work on a lane-dense tile; the op is HBM-bandwidth bound.
    o_ref[...] = x_ref[...] * jnp.asarray(0.0, dtype=x_ref.dtype)


def _sublane_packing(dtype):
    itemsize = jnp.dtype(dtype).itemsize
    if itemsize >= 4:
        return 8
    if itemsize == 2:
        return 16
    return 32


def _run_2d(slab, tm):
    """Launch the kernel over a 2-D slab, tiling rows with block height tm."""
    rows, cols = slab.shape
    dtype = slab.dtype
    tile_bytes = tm * cols * jnp.dtype(dtype).itemsize
    vmem_limit = int(min(max(4 * tile_bytes + (2 << 20), 4 << 20), _VMEM_CAP_BYTES))
    grid = (pl.cdiv(rows, tm),)
    return pl.pallas_call(
        _zero_kernel,
        out_shape=jax.ShapeDtypeStruct((rows, cols), dtype),
        grid_spec=pltpu.PrefetchScalarGridSpec(
            num_scalar_prefetch=0,
            grid=grid,
            in_specs=[pl.BlockSpec((tm, cols), lambda i: (i, 0))],
            out_specs=pl.BlockSpec((tm, cols), lambda i: (i, 0)),
        ),
        compiler_params=pltpu.CompilerParams(
            dimension_semantics=("parallel",),
            vmem_limit_bytes=vmem_limit,
        ),
    )(slab)


def zero_forward(x, *, target_tile_bytes=_TARGET_TILE_BYTES,
                 small_input_xla_fallback=False):
    """Pallas implementation of Zero.forward: out = x * 0.0 (same shape/dtype)."""
    shape = x.shape
    dtype = x.dtype
    itemsize = jnp.dtype(dtype).itemsize
    total = 1
    for d in shape:
        total *= int(d)

    if total == 0:
        return jnp.zeros(shape, dtype)

    total_bytes = total * itemsize

    # Optional production-mode escape hatch: custom-call overhead dominates
    # tiny transfers.  Off by default so the Pallas kernel is always exercised.
    if small_input_xla_fallback and total_bytes < (1 << 20):
        return x * jnp.asarray(0.0, dtype)

    sub = _sublane_packing(dtype)

    # --- Fast path: flatten (free, contiguous) into a wide lane-dense slab.
    lanes = None
    for w in (1024, 512, 256, 128):
        if total % w == 0 and (total // w) % sub == 0:
            lanes = w
            break

    if lanes is not None:
        rows = total // lanes
        cols = lanes
    else:
        # --- Ragged path: keep the original trailing dim as a full-extent
        # block dim (exempt from the (8,128) rule); tile only over rows.
        # No pad / slice copies are ever made.
        if len(shape) >= 2:
            cols = int(shape[-1])
            rows = total // cols
        else:
            cols = total
            rows = 1
        # Note: a single huge ragged row (rows == 1, cols >> VMEM) would need
        # trailing-dim tiling as well; not needed for realistic model shapes.
    slab = x.reshape(rows, cols)

    # ~target_tile_bytes per tile, rounded to the dtype's sublane packing.
    row_bytes = cols * itemsize
    tm = max(1, target_tile_bytes // row_bytes)
    tm = max(sub, (tm // sub) * sub)
    if tm >= rows:
        tm = rows                       # full-extent block is always legal

    # v7x: make sure mid/large inputs get >= 2 grid steps so the "parallel"
    # axis shards across both TensorCores.
    if total_bytes >= (4 << 20) and tm == rows and rows > sub:
        half = ((pl.cdiv(rows, 2) + sub - 1) // sub) * sub
        half = max(sub, min(half, rows))
        if half < rows:
            tm = half

    out_slab = _run_2d(slab, tm)
    return out_slab.reshape(shape)


if __name__ == "__main__":
    key = jax.random.PRNGKey(0)
    B, C, H, W = 2, 4, 16, 16
    x = jax.random.normal(key, (B, C, H, W), dtype=jnp.float32)

    # Main check (fast lane-dense path).
    out = jax.block_until_ready(zero_forward(x))
    ref = x * 0.0
    assert out.shape == x.shape
    assert out.dtype == x.dtype
    assert bool(jnp.all(out == ref))
    assert bool(jnp.all(out == 0.0))

    # NaN/Inf propagation matches torch's x.mul(0.0).
    x_nan = x.at[0, 0, 0, 0].set(jnp.nan).at[0, 0, 0, 1].set(jnp.inf)
    out_nan = jax.block_until_ready(zero_forward(x_nan))
    assert bool(jnp.isnan(out_nan[0, 0, 0, 0]))
    assert bool(jnp.isnan(out_nan[0, 0, 0, 1]))
    assert bool(jnp.all(out_nan[1] == 0.0))

    # Ragged shape exercises the no-pad full-trailing-dim path.
    y = jax.random.normal(jax.random.PRNGKey(1), (3, 5, 7), dtype=jnp.float32)
    out_y = jax.block_until_ready(zero_forward(y))
    assert out_y.shape == y.shape
    assert bool(jnp.all(out_y == 0.0))

    print("KERNEL_OK")
</pallas_src>

<mosaic_0001>
module attributes {stable_mosaic.version = 11 : i64} {
  func.func @_zero_kernel(%arg0: i32, %arg1: memref<8x256xf32, #tpu.memory_space<vmem>>, %arg2: memref<8x256xf32, #tpu.memory_space<vmem>>) attributes {dimension_semantics = [#tpu.dimension_semantics<parallel>], iteration_bounds = array<i64: 1>, scalar_prefetch = 0 : i64, scratch_operands = 0 : i64, tpu.core_type = #tpu.core_type<tc>, window_params = [{transform_indices = @transform_0, window_bounds = array<i64: 8, 256>}, {transform_indices = @transform_1, window_bounds = array<i64: 8, 256>}]} {
    %c0 = arith.constant 0 : index
    %c0_0 = arith.constant 0 : index
    %0 = vector.load %arg1[%c0, %c0_0] : memref<8x256xf32, #tpu.memory_space<vmem>>, vector<8x256xf32>
    %cst = arith.constant 0.000000e+00 : f32
    %1 = vector.broadcast %cst : f32 to vector<8x256xf32>
    %2 = arith.mulf %0, %1 : vector<8x256xf32>
    %c0_1 = arith.constant 0 : index
    %c0_2 = arith.constant 0 : index
    %3 = vector.load %arg2[%c0_1, %c0_2] : memref<8x256xf32, #tpu.memory_space<vmem>>, vector<8x256xf32>
    tpu.vector_store %arg2[%c0_1, %c0_2], %2 {strides = array<i32>} : memref<8x256xf32, #tpu.memory_space<vmem>>, vector<8x256xf32>,
    return
  }
  func.func @transform_0(%arg0: i32) -> (i32, i32) {
    %c0_i32 = arith.constant 0 : i32
    %c0_i32_0 = arith.constant 0 : i32
    return %arg0, %c0_i32 : i32, i32
  }
  func.func @transform_1(%arg0: i32) -> (i32, i32) {
    %c0_i32 = arith.constant 0 : i32
    %c0_i32_0 = arith.constant 0 : i32
    return %arg0, %c0_i32 : i32, i32
  }
}

</mosaic_0001>

<llo_original>
// kernel: tpu_custom_call.1
$region0: #{tpu_custom_call.1}
  #allocation0 [shape = 'u32[]', space=smem, size = 0x4, offset = 0x4, fixed_abs, tag = 'smem constant byte address 0x4 - core index']
  #allocation1 [shape = 'u32[144,128]{1,0:T(1,128)}', space=vmem, size = 0x12000, scoped, tag = 'internal scratch']
  %s0 = inlined_call_operand.hbm [shape: f32[8,256], index: 0, kind: input, shape index: {}]
  %s1 = inlined_call_operand.hbm [shape: f32[8,256], index: 1, kind: output, shape index: {}]
  %s2 = sld [smem:[#allocation0]]
  $region18: #{tpu_custom_call.1} parent=0
    _
  %s4 = ssub.s32 1, %s2
  %s5 = scalar_select 0, %s4, %s2
  $region1: #{tpu_custom_call.1} parent=0
    #allocation2 [shape = 'u8[8192]{0}', space=vmem, size = 0x2000, scoped, tag = 'input window, operand 0, single buffered']
    #allocation3 [shape = 's32[1]{0}', space=sflag, size = 0x4, scoped, tag = 'scoped memory for tpu_custom_call.1']
    #allocation4 [shape = 's32[1]{0}', space=sflag, size = 0x4, scoped, tag = 'scoped memory for tpu_custom_call.1']
    #allocation5 [shape = 'u8[8192]{0}', space=vmem, size = 0x2000, scoped, tag = 'output window, operand 0, single buffered']
    %6 = vsyncpa [#allocation3], 0
    %7 = vsyncpa [#allocation4], 0
    // Predicated region
    $region2: #{tpu_custom_call.1} parent=1 // pred_check
      _
    $region3: #{tpu_custom_call.1} parent=1 // pred_check_branch
      %9 = sbr.rel (0) target = $region5
    $region4: #{tpu_custom_call.1} parent=1 // pred_region
      %s11 = ssub.s32 256, 256
      %12 = vsyncadd [#allocation3], %s11
      %s14 = sshll.u32 [#allocation2], 4
      %s15 = int_to_ptr.vmem [resolvable:$true] %s14
      %17 = dma.hbm_to_vmem [thread:$0]  %s0, 256, %s15, [#allocation3]
    $region5: #{tpu_custom_call.1} parent=1 // pred_fallthru
      _
    // Predicated region
    $region6: #{tpu_custom_call.1} parent=1 // pred_check
      _
    $region7: #{tpu_custom_call.1} parent=1 // pred_check_branch
      %19 = sbr.rel (0) target = $region9
    $region8: #{tpu_custom_call.1} parent=1 // pred_region
      %20 = dma.done [#allocation3], 256
    $region9: #{tpu_custom_call.1} parent=1 // pred_fallthru
      _
    %v21 = vld [vmem:[#allocation2] sm:$0xff]
    %v22 = vld [vmem:[#allocation2 + $0x8] sm:$0xff]
    %v23 = vmul.f32 %v21, 0.0
    %v24 = vmul.f32 %v22, 0.0
    %25 = vst [vmem:[#allocation5] sm:$0xff] %v23
    %26 = vst [vmem:[#allocation5 + $0x8] sm:$0xff] %v24
    // Predicated region
    $region10: #{tpu_custom_call.1} parent=1 // pred_check
      _
    $region11: #{tpu_custom_call.1} parent=1 // pred_check_branch
      %28 = sbr.rel (0) target = $region13
    $region12: #{tpu_custom_call.1} parent=1 // pred_region
      %s30 = ssub.s32 256, 256
      %31 = vsyncadd [#allocation4], %s30
      %s33 = sshll.u32 [#allocation5], 4
      %s34 = int_to_ptr.vmem [resolvable:$true] %s33
      %36 = dma.vmem_to_hbm [thread:$0]  %s34, 256, %s1, [#allocation4]
    $region13: #{tpu_custom_call.1} parent=1 // pred_fallthru
      _
    // Predicated region
    $region14: #{tpu_custom_call.1} parent=1 // pred_check
      _
    $region15: #{tpu_custom_call.1} parent=1 // pred_check_branch
      %38 = sbr.rel (0) target = $region17
    $region16: #{tpu_custom_call.1} parent=1 // pred_region
      %39 = dma.done [#allocation4], 256
    $region17: #{tpu_custom_call.1} parent=1 // pred_fallthru
      _
    %40 = vsyncpa [#allocation3], 1
    %41 = vsyncpa [#allocation4], 1

</llo_original>
